<compile_context>
chip_gen: v6e
topology: v6e:2x2x1
jax: 0.10.0
libtpu: 0.0.40
codegen_flags: <defaults>
</compile_context>

<pallas_src>
import math

import jax
import jax.numpy as jnp
from jax.experimental import pallas as pl
from jax.experimental.pallas import tpu as pltpu

# ---------------- model hyperparameters (small, consistent with the module) ----
BATCH = 8
NUM_CHOICES = 4
VOCAB_SIZE = 32                      # = input_size // num_choices
INPUT_SIZE = NUM_CHOICES * VOCAB_SIZE
HIDDEN = 32
NUM_LABELS = 4
DROPOUT_PROB = 0.2                   # eval-mode: dropout is a no-op in forward

PAD = NUM_CHOICES * HIDDEN           # 128: uniform lane width for every layer
NUM_LAYERS = 8                       # 4 encoder + linear3/4/5 + final_layer
RELU_LAYERS = (0, 1, 2, 4, 5, 6)     # clamp(min=0) after these; not after enc L4 / final


# ---------------- Pallas kernel -----------------------------------------------
def tied_classifier_kernel(x_ref, w_ref, b_ref, out_ref):
    """
    x_ref  : [B, 128]        f32 input (C*V = 128 lanes, already lane-dense)
    w_ref  : [8, 128, 128]   weight slab (bf16 or f32); layers 0-3 block-diag
                             tied encoder, layers 4-7 zero-padded head
    b_ref  : [8, 1, 128]     f32 bias slab (encoder biases tiled, head padded)
    out_ref: [B, 128]        f32 log-probs, lanes >= NUM_LABELS are -inf
    """
    h = x_ref[...]                                            # [B, 128] f32

    # 8 uniform [B,128]x[128,128] matmuls. Activations stay f32; bf16 weights
    # are promoted inside the dot (rounded once at pack time only).
    for layer in range(NUM_LAYERS):
        y = jnp.dot(h, w_ref[layer],
                    preferred_element_type=jnp.float32) + b_ref[layer]
        if layer in RELU_LAYERS:
            y = jnp.maximum(y, 0.0)   # clamp(min=0); dropout = identity (eval)
        h = y

    # --- log_softmax along dim=1 on the padded [B,128] logits ---------------
    # Lanes >= NUM_LABELS are zero-padded garbage: mask to -inf so they
    # contribute exp(-inf)=0 to the lse.
    lane = jax.lax.broadcasted_iota(jnp.int32, h.shape, dimension=1)
    logits = jnp.where(lane < NUM_LABELS, h, -jnp.inf)
    m = jnp.max(logits, axis=1, keepdims=True)
    shifted = logits - m
    lse = jnp.log(jnp.sum(jnp.exp(shifted), axis=1, keepdims=True))
    out_ref[...] = shifted - lse      # lane-dense [B,128] store; slice outside


# ---------------- parameter packing (done once, outside the kernel) ------------
def _block_diag(w, n):
    """Block-diagonal matrix with n copies of w ([in, out]) -> [n*in, n*out]."""
    fi, fo = w.shape
    out = jnp.zeros((n * fi, n * fo), dtype=w.dtype)
    for i in range(n):
        out = out.at[i * fi:(i + 1) * fi, i * fo:(i + 1) * fo].set(w)
    return out


def _pad_mat(w, rows=PAD, cols=PAD):
    fi, fo = w.shape
    return jnp.zeros((rows, cols), dtype=w.dtype).at[:fi, :fo].set(w)


def _pad_bias(b, cols=PAD):
    return jnp.zeros((1, cols), dtype=jnp.float32).at[:, :b.shape[1]].set(b)


def pack_params(params, w_dtype=jnp.bfloat16):
    """Collapse the 16 raw tensors into 2 packed slabs (one weight, one bias)."""
    (pw1, pb1, pw2, pb2, pw3, pb3, pw4, pb4,
     w3, b3, w4, b4, w5, b5, wf, bf) = params

    enc_ws = [_block_diag(w, NUM_CHOICES) for w in (pw1, pw2, pw3, pw4)]  # [128,128]
    head_ws = [_pad_mat(w3), _pad_mat(w4), _pad_mat(w5), _pad_mat(wf)]    # [128,128]
    w_slab = jnp.stack(enc_ws + head_ws).astype(w_dtype)                  # [8,128,128]

    enc_bs = [jnp.tile(b, (1, NUM_CHOICES)) for b in (pb1, pb2, pb3, pb4)]  # [1,128]
    head_bs = [_pad_bias(b3), _pad_bias(b4), _pad_bias(b5), _pad_bias(bf)]
    b_slab = jnp.stack(enc_bs + head_bs).astype(jnp.float32)              # [8,1,128]
    return w_slab, b_slab


# ---------------- wrapper ------------------------------------------------------
def tied_classifier_forward(x, packed_params):
    """x: [B, INPUT_SIZE] f32, packed_params from pack_params -> log-probs [B, NUM_LABELS]."""
    w_slab, b_slab = packed_params
    B = x.shape[0]
    Bp = max(8, ((B + 7) // 8) * 8)           # sublane-align the f32 batch
    if Bp != B:
        x = jnp.pad(x, ((0, Bp - B), (0, 0)))
    x = x.astype(jnp.float32)

    vmem = pl.BlockSpec(memory_space=pltpu.MemorySpace.VMEM)
    out_pad = pl.pallas_call(
        tied_classifier_kernel,
        out_shape=jax.ShapeDtypeStruct((Bp, PAD), jnp.float32),
        in_specs=[vmem, vmem, vmem],
        out_specs=vmem,
    )(x, w_slab, b_slab)
    return out_pad[:B, :NUM_LABELS]


# ---------------- deterministic parameter init ---------------------------------
def xavier_uniform(key, fan_in, fan_out):
    bound = math.sqrt(6.0 / (fan_in + fan_out))
    # stored as [in, out] (transposed vs. PyTorch's [out, in]); bound is symmetric.
    return jax.random.uniform(
        key, (fan_in, fan_out), dtype=jnp.float32, minval=-bound, maxval=bound
    )


def init_params(key):
    shapes = [
        (VOCAB_SIZE, HIDDEN),             # PhraseEncoder linear1
        (HIDDEN, HIDDEN),                 # linear2
        (HIDDEN, HIDDEN),                 # linear3
        (HIDDEN, HIDDEN),                 # linear4
        (NUM_CHOICES * HIDDEN, HIDDEN),   # TiedClassifier linear3
        (HIDDEN, HIDDEN),                 # linear4
        (HIDDEN, HIDDEN),                 # linear5
        (HIDDEN, NUM_LABELS),             # final_layer
    ]
    keys = jax.random.split(key, 2 * len(shapes))
    params = []
    for idx, (fi, fo) in enumerate(shapes):
        w = xavier_uniform(keys[2 * idx], fi, fo)
        # NOTE: PyTorch init zeroes biases; we use small random biases purely so
        # the correctness check actually exercises the bias tiling/padding.
        b = 0.1 * jax.random.normal(keys[2 * idx + 1], (1, fo), dtype=jnp.float32)
        params.extend([w, b])
    return params


# ---------------- pure-JAX reference for sanity check --------------------------
def reference_forward(x, params):
    (pw1, pb1, pw2, pb2, pw3, pb3, pw4, pb4,
     w3, b3, w4, b4, w5, b5, wf, bf) = params

    def enc(xc):
        h = jnp.maximum(xc @ pw1 + pb1, 0.0)
        h = jnp.maximum(h @ pw2 + pb2, 0.0)
        h = jnp.maximum(h @ pw3 + pb3, 0.0)
        return h @ pw4 + pb4

    outs = [enc(x[:, i * VOCAB_SIZE:(i + 1) * VOCAB_SIZE]) for i in range(NUM_CHOICES)]
    h = jnp.concatenate(outs, axis=1)
    h = jnp.maximum(h @ w3 + b3, 0.0)
    h = jnp.maximum(h @ w4 + b4, 0.0)
    h = jnp.maximum(h @ w5 + b5, 0.0)
    logits = h @ wf + bf
    return jax.nn.log_softmax(logits, axis=1)


if __name__ == "__main__":
    key = jax.random.PRNGKey(0)
    k_x, k_p = jax.random.split(key)
    x = jax.random.normal(k_x, (BATCH, INPUT_SIZE), dtype=jnp.float32)
    params = init_params(k_p)
    ref = reference_forward(x, params)

    # 1) f32 weights end-to-end: proves block-diag + lane-padding + masked
    #    log-softmax restructuring is numerically exact.
    out_f32 = jax.block_until_ready(
        tied_classifier_forward(x, pack_params(params, jnp.float32)))
    assert out_f32.shape == (BATCH, NUM_LABELS)
    assert jnp.allclose(out_f32, ref, atol=1e-5, rtol=1e-5), "f32 mismatch vs. reference"

    # 2) bf16 weight slab (activations stay f32, weights rounded once): looser tol.
    out_bf16 = jax.block_until_ready(
        tied_classifier_forward(x, pack_params(params, jnp.bfloat16)))
    assert jnp.allclose(out_bf16, ref, atol=3e-2, rtol=3e-2), "bf16 mismatch vs. reference"
    # log-softmax rows should sum to ~1 in prob space
    assert jnp.allclose(jnp.sum(jnp.exp(out_bf16), axis=1), 1.0, atol=1e-3)

    print("KERNEL_OK")
</pallas_src>

<mosaic_0001>
module attributes {stable_mosaic.version = 11 : i64} {
  func.func @tied_classifier_kernel(%arg0: memref<8x128xf32, #tpu.memory_space<vmem>>, %arg1: memref<8x128x128xf32, #tpu.memory_space<vmem>>, %arg2: memref<8x1x128xf32, #tpu.memory_space<vmem>>, %arg3: memref<8x128xf32, #tpu.memory_space<vmem>>) attributes {dimension_semantics = [], scalar_prefetch = 0 : i64, scratch_operands = 0 : i64, tpu.core_type = #tpu.core_type<tc>} {
    %c0 = arith.constant 0 : index
    %c0_0 = arith.constant 0 : index
    %0 = vector.load %arg0[%c0, %c0_0] : memref<8x128xf32, #tpu.memory_space<vmem>>, vector<8x128xf32>
    %c0_1 = arith.constant 0 : index
    %c0_2 = arith.constant 0 : index
    %c0_3 = arith.constant 0 : index
    %1 = vector.load %arg1[%c0_1, %c0_2, %c0_3] : memref<8x128x128xf32, #tpu.memory_space<vmem>>, vector<1x128x128xf32>
    %2 = vector.shape_cast %1 : vector<1x128x128xf32> to vector<128x128xf32>
    %cst = arith.constant dense<0.000000e+00> : vector<8x128xf32>
    %3 = tpu.matmul %0, %2, %cst {dimension_numbers = #tpu.dot_dimension_numbers<[1], [0], [0], [1], [0, 0, 1, 1], [], []>} : vector<8x128xf32>, vector<128x128xf32>, vector<8x128xf32> -> vector<8x128xf32>
    %c0_4 = arith.constant 0 : index
    %c0_5 = arith.constant 0 : index
    %c0_6 = arith.constant 0 : index
    %4 = vector.load %arg2[%c0_4, %c0_5, %c0_6] : memref<8x1x128xf32, #tpu.memory_space<vmem>>, vector<1x1x128xf32>
    %5 = vector.shape_cast %4 : vector<1x1x128xf32> to vector<1x128xf32>
    %6 = vector.broadcast %5 : vector<1x128xf32> to vector<8x128xf32>
    %7 = arith.addf %3, %6 : vector<8x128xf32>
    %cst_7 = arith.constant 0.000000e+00 : f32
    %8 = vector.broadcast %cst_7 : f32 to vector<8x128xf32>
    %9 = arith.maximumf %7, %8 : vector<8x128xf32>
    %c1 = arith.constant 1 : index
    %c0_8 = arith.constant 0 : index
    %c0_9 = arith.constant 0 : index
    %10 = vector.load %arg1[%c1, %c0_8, %c0_9] : memref<8x128x128xf32, #tpu.memory_space<vmem>>, vector<1x128x128xf32>
    %11 = vector.shape_cast %10 : vector<1x128x128xf32> to vector<128x128xf32>
    %cst_10 = arith.constant dense<0.000000e+00> : vector<8x128xf32>
    %12 = tpu.matmul %9, %11, %cst_10 {dimension_numbers = #tpu.dot_dimension_numbers<[1], [0], [0], [1], [0, 0, 1, 1], [], []>} : vector<8x128xf32>, vector<128x128xf32>, vector<8x128xf32> -> vector<8x128xf32>
    %c1_11 = arith.constant 1 : index
    %c0_12 = arith.constant 0 : index
    %c0_13 = arith.constant 0 : index
    %13 = vector.load %arg2[%c1_11, %c0_12, %c0_13] : memref<8x1x128xf32, #tpu.memory_space<vmem>>, vector<1x1x128xf32>
    %14 = vector.shape_cast %13 : vector<1x1x128xf32> to vector<1x128xf32>
    %15 = vector.broadcast %14 : vector<1x128xf32> to vector<8x128xf32>
    %16 = arith.addf %12, %15 : vector<8x128xf32>
    %cst_14 = arith.constant 0.000000e+00 : f32
    %17 = vector.broadcast %cst_14 : f32 to vector<8x128xf32>
    %18 = arith.maximumf %16, %17 : vector<8x128xf32>
    %c2 = arith.constant 2 : index
    %c0_15 = arith.constant 0 : index
    %c0_16 = arith.constant 0 : index
    %19 = vector.load %arg1[%c2, %c0_15, %c0_16] : memref<8x128x128xf32, #tpu.memory_space<vmem>>, vector<1x128x128xf32>
    %20 = vector.shape_cast %19 : vector<1x128x128xf32> to vector<128x128xf32>
    %cst_17 = arith.constant dense<0.000000e+00> : vector<8x128xf32>
    %21 = tpu.matmul %18, %20, %cst_17 {dimension_numbers = #tpu.dot_dimension_numbers<[1], [0], [0], [1], [0, 0, 1, 1], [], []>} : vector<8x128xf32>, vector<128x128xf32>, vector<8x128xf32> -> vector<8x128xf32>
    %c2_18 = arith.constant 2 : index
    %c0_19 = arith.constant 0 : index
    %c0_20 = arith.constant 0 : index
    %22 = vector.load %arg2[%c2_18, %c0_19, %c0_20] : memref<8x1x128xf32, #tpu.memory_space<vmem>>, vector<1x1x128xf32>
    %23 = vector.shape_cast %22 : vector<1x1x128xf32> to vector<1x128xf32>
    %24 = vector.broadcast %23 : vector<1x128xf32> to vector<8x128xf32>
    %25 = arith.addf %21, %24 : vector<8x128xf32>
    %cst_21 = arith.constant 0.000000e+00 : f32
    %26 = vector.broadcast %cst_21 : f32 to vector<8x128xf32>
    %27 = arith.maximumf %25, %26 : vector<8x128xf32>
    %c3 = arith.constant 3 : index
    %c0_22 = arith.constant 0 : index
    %c0_23 = arith.constant 0 : index
    %28 = vector.load %arg1[%c3, %c0_22, %c0_23] : memref<8x128x128xf32, #tpu.memory_space<vmem>>, vector<1x128x128xf32>
    %29 = vector.shape_cast %28 : vector<1x128x128xf32> to vector<128x128xf32>
    %cst_24 = arith.constant dense<0.000000e+00> : vector<8x128xf32>
    %30 = tpu.matmul %27, %29, %cst_24 {dimension_numbers = #tpu.dot_dimension_numbers<[1], [0], [0], [1], [0, 0, 1, 1], [], []>} : vector<8x128xf32>, vector<128x128xf32>, vector<8x128xf32> -> vector<8x128xf32>
    %c3_25 = arith.constant 3 : index
    %c0_26 = arith.constant 0 : index
    %c0_27 = arith.constant 0 : index
    %31 = vector.load %arg2[%c3_25, %c0_26, %c0_27] : memref<8x1x128xf32, #tpu.memory_space<vmem>>, vector<1x1x128xf32>
    %32 = vector.shape_cast %31 : vector<1x1x128xf32> to vector<1x128xf32>
    %33 = vector.broadcast %32 : vector<1x128xf32> to vector<8x128xf32>
    %34 = arith.addf %30, %33 : vector<8x128xf32>
    %c4 = arith.constant 4 : index
    %c0_28 = arith.constant 0 : index
    %c0_29 = arith.constant 0 : index
    %35 = vector.load %arg1[%c4, %c0_28, %c0_29] : memref<8x128x128xf32, #tpu.memory_space<vmem>>, vector<1x128x128xf32>
    %36 = vector.shape_cast %35 : vector<1x128x128xf32> to vector<128x128xf32>
    %cst_30 = arith.constant dense<0.000000e+00> : vector<8x128xf32>
    %37 = tpu.matmul %34, %36, %cst_30 {dimension_numbers = #tpu.dot_dimension_numbers<[1], [0], [0], [1], [0, 0, 1, 1], [], []>} : vector<8x128xf32>, vector<128x128xf32>, vector<8x128xf32> -> vector<8x128xf32>
    %c4_31 = arith.constant 4 : index
    %c0_32 = arith.constant 0 : index
    %c0_33 = arith.constant 0 : index
    %38 = vector.load %arg2[%c4_31, %c0_32, %c0_33] : memref<8x1x128xf32, #tpu.memory_space<vmem>>, vector<1x1x128xf32>
    %39 = vector.shape_cast %38 : vector<1x1x128xf32> to vector<1x128xf32>
    %40 = vector.broadcast %39 : vector<1x128xf32> to vector<8x128xf32>
    %41 = arith.addf %37, %40 : vector<8x128xf32>
    %cst_34 = arith.constant 0.000000e+00 : f32
    %42 = vector.broadcast %cst_34 : f32 to vector<8x128xf32>
    %43 = arith.maximumf %41, %42 : vector<8x128xf32>
    %c5 = arith.constant 5 : index
    %c0_35 = arith.constant 0 : index
    %c0_36 = arith.constant 0 : index
    %44 = vector.load %arg1[%c5, %c0_35, %c0_36] : memref<8x128x128xf32, #tpu.memory_space<vmem>>, vector<1x128x128xf32>
    %45 = vector.shape_cast %44 : vector<1x128x128xf32> to vector<128x128xf32>
    %cst_37 = arith.constant dense<0.000000e+00> : vector<8x128xf32>
    %46 = tpu.matmul %43, %45, %cst_37 {dimension_numbers = #tpu.dot_dimension_numbers<[1], [0], [0], [1], [0, 0, 1, 1], [], []>} : vector<8x128xf32>, vector<128x128xf32>, vector<8x128xf32> -> vector<8x128xf32>
    %c5_38 = arith.constant 5 : index
    %c0_39 = arith.constant 0 : index
    %c0_40 = arith.constant 0 : index
    %47 = vector.load %arg2[%c5_38, %c0_39, %c0_40] : memref<8x1x128xf32, #tpu.memory_space<vmem>>, vector<1x1x128xf32>
    %48 = vector.shape_cast %47 : vector<1x1x128xf32> to vector<1x128xf32>
    %49 = vector.broadcast %48 : vector<1x128xf32> to vector<8x128xf32>
    %50 = arith.addf %46, %49 : vector<8x128xf32>
    %cst_41 = arith.constant 0.000000e+00 : f32
    %51 = vector.broadcast %cst_41 : f32 to vector<8x128xf32>
    %52 = arith.maximumf %50, %51 : vector<8x128xf32>
    %c6 = arith.constant 6 : index
    %c0_42 = arith.constant 0 : index
    %c0_43 = arith.constant 0 : index
    %53 = vector.load %arg1[%c6, %c0_42, %c0_43] : memref<8x128x128xf32, #tpu.memory_space<vmem>>, vector<1x128x128xf32>
    %54 = vector.shape_cast %53 : vector<1x128x128xf32> to vector<128x128xf32>
    %cst_44 = arith.constant dense<0.000000e+00> : vector<8x128xf32>
    %55 = tpu.matmul %52, %54, %cst_44 {dimension_numbers = #tpu.dot_dimension_numbers<[1], [0], [0], [1], [0, 0, 1, 1], [], []>} : vector<8x128xf32>, vector<128x128xf32>, vector<8x128xf32> -> vector<8x128xf32>
    %c6_45 = arith.constant 6 : index
    %c0_46 = arith.constant 0 : index
    %c0_47 = arith.constant 0 : index
    %56 = vector.load %arg2[%c6_45, %c0_46, %c0_47] : memref<8x1x128xf32, #tpu.memory_space<vmem>>, vector<1x1x128xf32>
    %57 = vector.shape_cast %56 : vector<1x1x128xf32> to vector<1x128xf32>
    %58 = vector.broadcast %57 : vector<1x128xf32> to vector<8x128xf32>
    %59 = arith.addf %55, %58 : vector<8x128xf32>
    %cst_48 = arith.constant 0.000000e+00 : f32
    %60 = vector.broadcast %cst_48 : f32 to vector<8x128xf32>
    %61 = arith.maximumf %59, %60 : vector<8x128xf32>
    %c7 = arith.constant 7 : index
    %c0_49 = arith.constant 0 : index
    %c0_50 = arith.constant 0 : index
    %62 = vector.load %arg1[%c7, %c0_49, %c0_50] : memref<8x128x128xf32, #tpu.memory_space<vmem>>, vector<1x128x128xf32>
    %63 = vector.shape_cast %62 : vector<1x128x128xf32> to vector<128x128xf32>
    %cst_51 = arith.constant dense<0.000000e+00> : vector<8x128xf32>
    %64 = tpu.matmul %61, %63, %cst_51 {dimension_numbers = #tpu.dot_dimension_numbers<[1], [0], [0], [1], [0, 0, 1, 1], [], []>} : vector<8x128xf32>, vector<128x128xf32>, vector<8x128xf32> -> vector<8x128xf32>
    %c7_52 = arith.constant 7 : index
    %c0_53 = arith.constant 0 : index
    %c0_54 = arith.constant 0 : index
    %65 = vector.load %arg2[%c7_52, %c0_53, %c0_54] : memref<8x1x128xf32, #tpu.memory_space<vmem>>, vector<1x1x128xf32>
    %66 = vector.shape_cast %65 : vector<1x1x128xf32> to vector<1x128xf32>
    %67 = vector.broadcast %66 : vector<1x128xf32> to vector<8x128xf32>
    %68 = arith.addf %64, %67 : vector<8x128xf32>
    %69 = tpu.iota {dimensions = array<i32: 1>} : vector<8x128xi32>
    %c4_i32 = arith.constant 4 : i32
    %70 = vector.broadcast %c4_i32 : i32 to vector<8x128xi32>
    %71 = arith.cmpi slt, %69, %70 : vector<8x128xi32>
    %cst_55 = arith.constant 0xFF800000 : f32
    %72 = vector.broadcast %cst_55 : f32 to vector<8x128xf32>
    %73 = arith.select %71, %68, %72 : vector<8x128xi1>, vector<8x128xf32>
    %cst_56 = arith.constant dense<0xFF800000> : vector<8xf32>
    %74 = vector.multi_reduction <maximumf>, %73, %cst_56 [1] : vector<8x128xf32> to vector<8xf32>
    %75 = vector.shape_cast %74 : vector<8xf32> to vector<8x1xf32>
    %76 = vector.broadcast %75 : vector<8x1xf32> to vector<8x128xf32>
    %77 = arith.subf %73, %76 : vector<8x128xf32>
    %78 = math.exp %77 : vector<8x128xf32>
    %cst_57 = arith.constant dense<0.000000e+00> : vector<8xf32>
    %79 = vector.multi_reduction <add>, %78, %cst_57 [1] : vector<8x128xf32> to vector<8xf32>
    %80 = vector.shape_cast %79 : vector<8xf32> to vector<8x1xf32>
    %81 = math.log %80 : vector<8x1xf32>
    %82 = vector.broadcast %81 : vector<8x1xf32> to vector<8x128xf32>
    %83 = arith.subf %77, %82 : vector<8x128xf32>
    %c0_58 = arith.constant 0 : index
    %c0_59 = arith.constant 0 : index
    %84 = vector.load %arg3[%c0_58, %c0_59] : memref<8x128xf32, #tpu.memory_space<vmem>>, vector<8x128xf32>
    tpu.vector_store %arg3[%c0_58, %c0_59], %83 {strides = array<i32>} : memref<8x128xf32, #tpu.memory_space<vmem>>, vector<8x128xf32>,
    return
  }
}

</mosaic_0001>

<llo_original>
// kernel: tpu_custom_call.1
$region0: #{tpu_custom_call.1}
  #allocation0 [shape = 'u32[]', space=smem, size = 0x4, offset = 0x4, fixed_abs, tag = 'smem constant byte address 0x4 - core index']
  #allocation1 [shape = 'u32[144,128]{1,0:T(1,128)}', space=vmem, size = 0x12000, scoped, tag = 'internal scratch']
  %s0 = inlined_call_operand.hbm [shape: f32[8,128], index: 0, kind: input, shape index: {}]
  %s1 = inlined_call_operand.hbm [shape: f32[8,128,128], index: 1, kind: input, shape index: {}]
  %s2 = inlined_call_operand.hbm [shape: f32[8,1,128], index: 2, kind: input, shape index: {}]
  %s3 = inlined_call_operand.hbm [shape: f32[8,128], index: 3, kind: output, shape index: {}]
  %s4 = sld [smem:[#allocation0]]
  $region34: #{tpu_custom_call.1} parent=0
    _
  %s6 = ssub.s32 1, %s4
  %s7 = scalar_select 0, %s6, %s4
  $region1: #{tpu_custom_call.1} parent=0
    #allocation2 [shape = 'u8[4096]{0}', space=vmem, size = 0x1000, scoped, tag = 'input window, operand 0, single buffered']
    #allocation3 [shape = 's32[1]{0}', space=sflag, size = 0x4, scoped, tag = 'scoped memory for tpu_custom_call.1']
    #allocation4 [shape = 's32[1]{0}', space=sflag, size = 0x4, scoped, tag = 'scoped memory for tpu_custom_call.1']
    #allocation5 [shape = 'u8[524288]{0}', space=vmem, size = 0x80000, scoped, tag = 'input window, operand 1, single buffered']
    #allocation6 [shape = 's32[1]{0}', space=sflag, size = 0x4, scoped, tag = 'scoped memory for tpu_custom_call.1']
    #allocation7 [shape = 'u8[4096]{0}', space=vmem, size = 0x1000, scoped, tag = 'input window, operand 2, single buffered']
    #allocation8 [shape = 'u8[4096]{0}', space=vmem, size = 0x1000, scoped, tag = 'output window, operand 0, single buffered']
    %8 = vsyncpa [#allocation3], 0
    %9 = vsyncpa [#allocation6], 0
    %10 = vsyncpa [#allocation4], 0
    // Predicated region
    $region2: #{tpu_custom_call.1} parent=1 // pred_check
      _
    $region3: #{tpu_custom_call.1} parent=1 // pred_check_branch
      %12 = sbr.rel (0) target = $region5
    $region4: #{tpu_custom_call.1} parent=1 // pred_region
      %s14 = ssub.s32 128, 128
      %15 = vsyncadd [#allocation3], %s14
      %s17 = sshll.u32 [#allocation2], 4
      %s18 = int_to_ptr.vmem [resolvable:$true] %s17
      %20 = dma.hbm_to_vmem [thread:$0]  %s0, 128, %s18, [#allocation3]
    $region5: #{tpu_custom_call.1} parent=1 // pred_fallthru
      _
    // Predicated region
    $region6: #{tpu_custom_call.1} parent=1 // pred_check
      _
    $region7: #{tpu_custom_call.1} parent=1 // pred_check_branch
      %22 = sbr.rel (0) target = $region9
    $region8: #{tpu_custom_call.1} parent=1 // pred_region
      %s24 = ssub.s32 16384, 16384
      %25 = vsyncadd [#allocation6], %s24
      %s26 = sshll.u32 [#allocation5], 4
      %s27 = int_to_ptr.vmem [resolvable:$true] %s26
      %32 = dma.hbm_to_vmem [thread:$0]  %s1, 16384, %s27, [#allocation6], 128, 128, 8
    $region9: #{tpu_custom_call.1} parent=1 // pred_fallthru
      _
    // Predicated region
    $region10: #{tpu_custom_call.1} parent=1 // pred_check
      _
    $region11: #{tpu_custom_call.1} parent=1 // pred_check_branch
      %34 = sbr.rel (0) target = $region13
    $region12: #{tpu_custom_call.1} parent=1 // pred_region
      %s36 = ssub.s32 128, 128
      %37 = vsyncadd [#allocation6], %s36
      %s38 = sshll.u32 [#allocation7], 4
      %s39 = int_to_ptr.vmem [resolvable:$true] %s38
      %44 = dma.hbm_to_vmem [thread:$0]  %s2, 128, %s39, [#allocation6], 16, 16, 1
    $region13: #{tpu_custom_call.1} parent=1 // pred_fallthru
      _
    // Predicated region
    $region14: #{tpu_custom_call.1} parent=1 // pred_check
      _
    $region15: #{tpu_custom_call.1} parent=1 // pred_check_branch
      %46 = sbr.rel (0) target = $region17
    $region16: #{tpu_custom_call.1} parent=1 // pred_region
      %47 = dma.done [#allocation3], 128
    $region17: #{tpu_custom_call.1} parent=1 // pred_fallthru
      _
    // Predicated region
    $region18: #{tpu_custom_call.1} parent=1 // pred_check
      _
    $region19: #{tpu_custom_call.1} parent=1 // pred_check_branch
      %49 = sbr.rel (0) target = $region21
    $region20: #{tpu_custom_call.1} parent=1 // pred_region
      %50 = dma.done [#allocation6], 16384
    $region21: #{tpu_custom_call.1} parent=1 // pred_fallthru
      _
    // Predicated region
    $region22: #{tpu_custom_call.1} parent=1 // pred_check
      _
    $region23: #{tpu_custom_call.1} parent=1 // pred_check_branch
      %52 = sbr.rel (0) target = $region25
    $region24: #{tpu_custom_call.1} parent=1 // pred_region
      %53 = dma.done [#allocation6], 128
    $region25: #{tpu_custom_call.1} parent=1 // pred_fallthru
      _
    %v54 = vld [vmem:[#allocation2] sm:$0xff]
    %v55 = vld [vmem:[#allocation5] sm:$0xff]
    %v56 = vld [vmem:[#allocation5 + $0x8] sm:$0xff]
    %v57 = vld [vmem:[#allocation5 + $0x10] sm:$0xff]
    %v58 = vld [vmem:[#allocation5 + $0x18] sm:$0xff]
    %v59 = vld [vmem:[#allocation5 + $0x20] sm:$0xff]
    %v60 = vld [vmem:[#allocation5 + $0x28] sm:$0xff]
    %v61 = vld [vmem:[#allocation5 + $0x30] sm:$0xff]
    %v62 = vld [vmem:[#allocation5 + $0x38] sm:$0xff]
    %v63 = vld [vmem:[#allocation5 + $0x40] sm:$0xff]
    %v64 = vld [vmem:[#allocation5 + $0x48] sm:$0xff]
    %v65 = vld [vmem:[#allocation5 + $0x50] sm:$0xff]
    %v66 = vld [vmem:[#allocation5 + $0x58] sm:$0xff]
    %v67 = vld [vmem:[#allocation5 + $0x60] sm:$0xff]
    %v68 = vld [vmem:[#allocation5 + $0x68] sm:$0xff]
    %v69 = vld [vmem:[#allocation5 + $0x70] sm:$0xff]
    %v70 = vld [vmem:[#allocation5 + $0x78] sm:$0xff]
    %v71 = vld [vmem:[#allocation7] sm:$0x1]
    %v73 = vlaneseq
    %v74 = vshrl.u32 %v73, 7
    %v75 = vsub.s32 0, %v74
    %v76 = vrot.slane %v71, %v75
    %78 = vmatprep.subr.mxu0 0.0
    %79 = vmatpush1.msra.mxu0 %v70
    %80 = vmatprep.subr.mxu0 0.0
    %81 = vmatpush1.msra.mxu0 %v69
    %82 = vmatprep.subr.mxu0 0.0
    %83 = vmatpush1.msra.mxu0 %v68
    %84 = vmatprep.subr.mxu0 0.0
    %85 = vmatpush1.msra.mxu0 %v67
    %86 = vmatprep.subr.mxu0 0.0
    %87 = vmatpush1.msra.mxu0 %v66
    %88 = vmatprep.subr.mxu0 0.0
    %89 = vmatpush1.msra.mxu0 %v65
    %90 = vmatprep.subr.mxu0 0.0
    %91 = vmatpush1.msra.mxu0 %v64
    %92 = vmatprep.subr.mxu0 0.0
    %93 = vmatpush1.msra.mxu0 %v63
    %94 = vmatprep.subr.mxu0 0.0
    %95 = vmatpush1.msra.mxu0 %v62
    %96 = vmatprep.subr.mxu0 0.0
    %97 = vmatpush1.msra.mxu0 %v61
    %98 = vmatprep.subr.mxu0 0.0
    %99 = vmatpush1.msra.mxu0 %v60
    %100 = vmatprep.subr.mxu0 0.0
    %101 = vmatpush1.msra.mxu0 %v59
    %102 = vmatprep.subr.mxu0 0.0
    %103 = vmatpush1.msra.mxu0 %v58
    %104 = vmatprep.subr.mxu0 0.0
    %105 = vmatpush1.msra.mxu0 %v57
    %106 = vmatprep.subr.mxu0 0.0
    %107 = vmatpush1.msra.mxu0 %v56
    %108 = vmatprep.subr.mxu0 0.0
    %109 = vmatpush1.msra.mxu0 %v55
    %110 = vmatprep.subr.mxu0 0.0
    %111 = vmatpush2.msra.mxu0 0.0
    %112 = vmatprep.subr.mxu0 0.0
    %113 = vmatpush2.msra.mxu0 0.0
    %114 = vmatprep.subr.mxu0 0.0
    %115 = vmatpush2.msra.mxu0 0.0
    %116 = vmatprep.subr.mxu0 0.0
    %117 = vmatpush2.msra.mxu0 0.0
    %118 = vmatprep.subr.mxu0 0.0
    %119 = vmatpush2.msra.mxu0 0.0
    %120 = vmatprep.subr.mxu0 0.0
    %121 = vmatpush2.msra.mxu0 0.0
    %122 = vmatprep.subr.mxu0 0.0
    %123 = vmatpush2.msra.mxu0 0.0
    %124 = vmatprep.subr.mxu0 0.0
    %125 = vmatpush2.msra.mxu0 0.0
    %126 = vmatprep.subr.mxu0 0.0
    %127 = vmatpush2.msra.mxu0 0.0
    %128 = vmatprep.subr.mxu0 0.0
    %129 = vmatpush2.msra.mxu0 0.0
    %130 = vmatprep.subr.mxu0 0.0
    %131 = vmatpush2.msra.mxu0 0.0
    %132 = vmatprep.subr.mxu0 0.0
    %133 = vmatpush2.msra.mxu0 0.0
    %134 = vmatprep.subr.mxu0 0.0
    %135 = vmatpush2.msra.mxu0 0.0
    %136 = vmatprep.subr.mxu0 0.0
    %137 = vmatpush2.msra.mxu0 0.0
    %138 = vmatprep.subr.mxu0 0.0
    %139 = vmatpush2.msra.mxu0 0.0
    %140 = vmatprep.subr.mxu0 0.0
    %141 = vmatpush2.msra.mxu0 0.0
    %142 = vmatprep.mubr.f32.mxu0 0.0
    %143 = vmatmul.mubr.f32.gmra.mxu0 %v54
    %v144 = vpop.f32.mrf.mxu0
    %v145 = vadd.f32 %v76, %v144
    %v146 = vpop.f32.mrf.mxu0
    %147 = vdwg.mxu0
    %v148 = vmax.f32 %v145, 0.0
    %s149 = scalar_lea.vmem [#allocation5], 128
    %v150 = vld [vmem:[%s149] sm:$0xff]
    %v151 = vld [vmem:[%s149 + $0x8] sm:$0xff]
    %v152 = vld [vmem:[%s149 + $0x10] sm:$0xff]
    %v153 = vld [vmem:[%s149 + $0x18] sm:$0xff]
    %v154 = vld [vmem:[%s149 + $0x20] sm:$0xff]
    %v155 = vld [vmem:[%s149 + $0x28] sm:$0xff]
    %v156 = vld [vmem:[%s149 + $0x30] sm:$0xff]
    %v157 = vld [vmem:[%s149 + $0x38] sm:$0xff]
    %v158 = vld [vmem:[%s149 + $0x40] sm:$0xff]
    %v159 = vld [vmem:[%s149 + $0x48] sm:$0xff]
    %v160 = vld [vmem:[%s149 + $0x50] sm:$0xff]
    %v161 = vld [vmem:[%s149 + $0x58] sm:$0xff]
    %v162 = vld [vmem:[%s149 + $0x60] sm:$0xff]
    %v163 = vld [vmem:[%s149 + $0x68] sm:$0xff]
    %v164 = vld [vmem:[%s149 + $0x70] sm:$0xff]
    %v165 = vld [vmem:[%s149 + $0x78] sm:$0xff]
    %s166 = scalar_lea.vmem [#allocation7], 1
    %v167 = vld [vmem:[%s166] sm:$0x1]
    %v169 = vlaneseq
    %v170 = vshrl.u32 %v169, 7
    %v171 = vsub.s32 0, %v170
    %v172 = vrot.slane %v167, %v171
    %174 = vmatprep.subr.mxu0 0.0
    %175 = vmatpush1.msra.mxu0 %v165
    %176 = vmatprep.subr.mxu0 0.0
    %177 = vmatpush1.msra.mxu0 %v164
    %178 = vmatprep.subr.mxu0 0.0
    %179 = vmatpush1.msra.mxu0 %v163
    %180 = vmatprep.subr.mxu0 0.0
    %181 = vmatpush1.msra.mxu0 %v162
    %182 = vmatprep.subr.mxu0 0.0
    %183 = vmatpush1.msra.mxu0 %v161
    %184 = vmatprep.subr.mxu0 0.0
    %185 = vmatpush1.msra.mxu0 %v160
    %186 = vmatprep.subr.mxu0 0.0
    %187 = vmatpush1.msra.mxu0 %v159
    %188 = vmatprep.subr.mxu0 0.0
    %189 = vmatpush1.msra.mxu0 %v158
    %190 = vmatprep.subr.mxu0 0.0
    %191 = vmatpush1.msra.mxu0 %v157
    %192 = vmatprep.subr.mxu0 0.0
    %193 = vmatpush1.msra.mxu0 %v156
    %194 = vmatprep.subr.mxu0 0.0
    %195 = vmatpush1.msra.mxu0 %v155
    %196 = vmatprep.subr.mxu0 0.0
    %197 = vmatpush1.msra.mxu0 %v154
    %198 = vmatprep.subr.mxu0 0.0
    %199 = vmatpush1.msra.mxu0 %v153
    %200 = vmatprep.subr.mxu0 0.0
    %201 = vmatpush1.msra.mxu0 %v152
    %202 = vmatprep.subr.mxu0 0.0
    %203 = vmatpush1.msra.mxu0 %v151
    %204 = vmatprep.subr.mxu0 0.0
    %205 = vmatpush1.msra.mxu0 %v150
    %206 = vmatprep.subr.mxu0 0.0
    %207 = vmatpush2.msra.mxu0 0.0
    %208 = vmatprep.subr.mxu0 0.0
    %209 = vmatpush2.msra.mxu0 0.0
    %210 = vmatprep.subr.mxu0 0.0
    %211 = vmatpush2.msra.mxu0 0.0
    %212 = vmatprep.subr.mxu0 0.0
    %213 = vmatpush2.msra.mxu0 0.0
    %214 = vmatprep.subr.mxu0 0.0
    %215 = vmatpush2.msra.mxu0 0.0
    %216 = vmatprep.subr.mxu0 0.0
    %217 = vmatpush2.msra.mxu0 0.0
    %218 = vmatprep.subr.mxu0 0.0
    %219 = vmatpush2.msra.mxu0 0.0
    %220 = vmatprep.subr.mxu0 0.0
    %221 = vmatpush2.msra.mxu0 0.0
    %222 = vmatprep.subr.mxu0 0.0
    %223 = vmatpush2.msra.mxu0 0.0
    %224 = vmatprep.subr.mxu0 0.0
    %225 = vmatpush2.msra.mxu0 0.0
    %226 = vmatprep.subr.mxu0 0.0
    %227 = vmatpush2.msra.mxu0 0.0
    %228 = vmatprep.subr.mxu0 0.0
    %229 = vmatpush2.msra.mxu0 0.0
    %230 = vmatprep.subr.mxu0 0.0
    %231 = vmatpush2.msra.mxu0 0.0
    %232 = vmatprep.subr.mxu0 0.0
    %233 = vmatpush2.msra.mxu0 0.0
    %234 = vmatprep.subr.mxu0 0.0
    %235 = vmatpush2.msra.mxu0 0.0
    %236 = vmatprep.subr.mxu0 0.0
    %237 = vmatpush2.msra.mxu0 0.0
    %238 = vmatprep.mubr.f32.mxu0 0.0
    %239 = vmatmul.mubr.f32.gmra.mxu0 %v148
    %v240 = vpop.f32.mrf.mxu0
    %v241 = vadd.f32 %v172, %v240
    %v242 = vpop.f32.mrf.mxu0
    %243 = vdwg.mxu0
    %v244 = vmax.f32 %v241, 0.0
    %s245 = scalar_lea.vmem [#allocation5], 256
    %v246 = vld [vmem:[%s245] sm:$0xff]
    %v247 = vld [vmem:[%s245 + $0x8] sm:$0xff]
    %v248 = vld [vmem:[%s245 + $0x10] sm:$0xff]
    %v249 = vld [vmem:[%s245 + $0x18] sm:$0xff]
    %v250 = vld [vmem:[%s245 + $0x20] sm:$0xff]
    %v251 = vld [vmem:[%s245 + $0x28] sm:$0xff]
    %v252 = vld [vmem:[%s245 + $0x30] sm:$0xff]
    %v253 = vld [vmem:[%s245 + $0x38] sm:$0xff]
    %v254 = vld [vmem:[%s245 + $0x40] sm:$0xff]
    %v255 = vld [vmem:[%s245 + $0x48] sm:$0xff]
    %v256 = vld [vmem:[%s245 + $0x50] sm:$0xff]
    %v257 = vld [vmem:[%s245 + $0x58] sm:$0xff]
    %v258 = vld [vmem:[%s245 + $0x60] sm:$0xff]
    %v259 = vld [vmem:[%s245 + $0x68] sm:$0xff]
    %v260 = vld [vmem:[%s245 + $0x70] sm:$0xff]
    %v261 = vld [vmem:[%s245 + $0x78] sm:$0xff]
    %s262 = scalar_lea.vmem [#allocation7], 2
    %v263 = vld [vmem:[%s262] sm:$0x1]
    %v265 = vlaneseq
    %v266 = vshrl.u32 %v265, 7
    %v267 = vsub.s32 0, %v266
    %v268 = vrot.slane %v263, %v267
    %270 = vmatprep.subr.mxu0 0.0
    %271 = vmatpush1.msra.mxu0 %v261
    %272 = vmatprep.subr.mxu0 0.0
    %273 = vmatpush1.msra.mxu0 %v260
    %274 = vmatprep.subr.mxu0 0.0
    %275 = vmatpush1.msra.mxu0 %v259
    %276 = vmatprep.subr.mxu0 0.0
    %277 = vmatpush1.msra.mxu0 %v258
    %278 = vmatprep.subr.mxu0 0.0
    %279 = vmatpush1.msra.mxu0 %v257
    %280 = vmatprep.subr.mxu0 0.0
    %281 = vmatpush1.msra.mxu0 %v256
    %282 = vmatprep.subr.mxu0 0.0
    %283 = vmatpush1.msra.mxu0 %v255
    %284 = vmatprep.subr.mxu0 0.0
    %285 = vmatpush1.msra.mxu0 %v254
    %286 = vmatprep.subr.mxu0 0.0
    %287 = vmatpush1.msra.mxu0 %v253
    %288 = vmatprep.subr.mxu0 0.0
    %289 = vmatpush1.msra.mxu0 %v252
    %290 = vmatprep.subr.mxu0 0.0
    %291 = vmatpush1.msra.mxu0 %v251
    %292 = vmatprep.subr.mxu0 0.0
    %293 = vmatpush1.msra.mxu0 %v250
    %294 = vmatprep.subr.mxu0 0.0
    %295 = vmatpush1.msra.mxu0 %v249
    %296 = vmatprep.subr.mxu0 0.0
    %297 = vmatpush1.msra.mxu0 %v248
    %298 = vmatprep.subr.mxu0 0.0
    %299 = vmatpush1.msra.mxu0 %v247
    %300 = vmatprep.subr.mxu0 0.0
    %301 = vmatpush1.msra.mxu0 %v246
    %302 = vmatprep.subr.mxu0 0.0
    %303 = vmatpush2.msra.mxu0 0.0
    %304 = vmatprep.subr.mxu0 0.0
    %305 = vmatpush2.msra.mxu0 0.0
    %306 = vmatprep.subr.mxu0 0.0
    %307 = vmatpush2.msra.mxu0 0.0
    %308 = vmatprep.subr.mxu0 0.0
    %309 = vmatpush2.msra.mxu0 0.0
    %310 = vmatprep.subr.mxu0 0.0
    %311 = vmatpush2.msra.mxu0 0.0
    %312 = vmatprep.subr.mxu0 0.0
    %313 = vmatpush2.msra.mxu0 0.0
    %314 = vmatprep.subr.mxu0 0.0
    %315 = vmatpush2.msra.mxu0 0.0
    %316 = vmatprep.subr.mxu0 0.0
    %317 = vmatpush2.msra.mxu0 0.0
    %318 = vmatprep.subr.mxu0 0.0
    %319 = vmatpush2.msra.mxu0 0.0
    %320 = vmatprep.subr.mxu0 0.0
    %321 = vmatpush2.msra.mxu0 0.0
    %322 = vmatprep.subr.mxu0 0.0
    %323 = vmatpush2.msra.mxu0 0.0
    %324 = vmatprep.subr.mxu0 0.0
    %325 = vmatpush2.msra.mxu0 0.0
    %326 = vmatprep.subr.mxu0 0.0
    %327 = vmatpush2.msra.mxu0 0.0
    %328 = vmatprep.subr.mxu0 0.0
    %329 = vmatpush2.msra.mxu0 0.0
    %330 = vmatprep.subr.mxu0 0.0
    %331 = vmatpush2.msra.mxu0 0.0
    %332 = vmatprep.subr.mxu0 0.0
    %333 = vmatpush2.msra.mxu0 0.0
    %334 = vmatprep.mubr.f32.mxu0 0.0
    %335 = vmatmul.mubr.f32.gmra.mxu0 %v244
    %v336 = vpop.f32.mrf.mxu0
    %v337 = vadd.f32 %v268, %v336
    %v338 = vpop.f32.mrf.mxu0
    %339 = vdwg.mxu0
    %v340 = vmax.f32 %v337, 0.0
    %s341 = scalar_lea.vmem [#allocation5], 384
    %v342 = vld [vmem:[%s341] sm:$0xff]
    %v343 = vld [vmem:[%s341 + $0x8] sm:$0xff]
    %v344 = vld [vmem:[%s341 + $0x10] sm:$0xff]
    %v345 = vld [vmem:[%s341 + $0x18] sm:$0xff]
    %v346 = vld [vmem:[%s341 + $0x20] sm:$0xff]
    %v347 = vld [vmem:[%s341 + $0x28] sm:$0xff]
    %v348 = vld [vmem:[%s341 + $0x30] sm:$0xff]
    %v349 = vld [vmem:[%s341 + $0x38] sm:$0xff]
    %v350 = vld [vmem:[%s341 + $0x40] sm:$0xff]
    %v351 = vld [vmem:[%s341 + $0x48] sm:$0xff]
    %v352 = vld [vmem:[%s341 + $0x50] sm:$0xff]
    %v353 = vld [vmem:[%s341 + $0x58] sm:$0xff]
    %v354 = vld [vmem:[%s341 + $0x60] sm:$0xff]
    %v355 = vld [vmem:[%s341 + $0x68] sm:$0xff]
    %v356 = vld [vmem:[%s341 + $0x70] sm:$0xff]
    %v357 = vld [vmem:[%s341 + $0x78] sm:$0xff]
    %s358 = scalar_lea.vmem [#allocation7], 3
    %v359 = vld [vmem:[%s358] sm:$0x1]
    %v361 = vlaneseq
    %v362 = vshrl.u32 %v361, 7
    %v363 = vsub.s32 0, %v362
    %v364 = vrot.slane %v359, %v363
    %366 = vmatprep.subr.mxu0 0.0
    %367 = vmatpush1.msra.mxu0 %v357
    %368 = vmatprep.subr.mxu0 0.0
    %369 = vmatpush1.msra.mxu0 %v356
    %370 = vmatprep.subr.mxu0 0.0
    %371 = vmatpush1.msra.mxu0 %v355
    %372 = vmatprep.subr.mxu0 0.0
    %373 = vmatpush1.msra.mxu0 %v354
    %374 = vmatprep.subr.mxu0 0.0
    %375 = vmatpush1.msra.mxu0 %v353
    %376 = vmatprep.subr.mxu0 0.0
    %377 = vmatpush1.msra.mxu0 %v352
    %378 = vmatprep.subr.mxu0 0.0
    %379 = vmatpush1.msra.mxu0 %v351
    %380 = vmatprep.subr.mxu0 0.0
    %381 = vmatpush1.msra.mxu0 %v350
    %382 = vmatprep.subr.mxu0 0.0
    %383 = vmatpush1.msra.mxu0 %v349
    %384 = vmatprep.subr.mxu0 0.0
    %385 = vmatpush1.msra.mxu0 %v348
    %386 = vmatprep.subr.mxu0 0.0
    %387 = vmatpush1.msra.mxu0 %v347
    %388 = vmatprep.subr.mxu0 0.0
    %389 = vmatpush1.msra.mxu0 %v346
    %390 = vmatprep.subr.mxu0 0.0
    %391 = vmatpush1.msra.mxu0 %v345
    %392 = vmatprep.subr.mxu0 0.0
    %393 = vmatpush1.msra.mxu0 %v344
    %394 = vmatprep.subr.mxu0 0.0
    %395 = vmatpush1.msra.mxu0 %v343
    %396 = vmatprep.subr.mxu0 0.0
    %397 = vmatpush1.msra.mxu0 %v342
    %398 = vmatprep.subr.mxu0 0.0
    %399 = vmatpush2.msra.mxu0 0.0
    %400 = vmatprep.subr.mxu0 0.0
    %401 = vmatpush2.msra.mxu0 0.0
    %402 = vmatprep.subr.mxu0 0.0
    %403 = vmatpush2.msra.mxu0 0.0
    %404 = vmatprep.subr.mxu0 0.0
    %405 = vmatpush2.msra.mxu0 0.0
    %406 = vmatprep.subr.mxu0 0.0
    %407 = vmatpush2.msra.mxu0 0.0
    %408 = vmatprep.subr.mxu0 0.0
    %409 = vmatpush2.msra.mxu0 0.0
    %410 = vmatprep.subr.mxu0 0.0
    %411 = vmatpush2.msra.mxu0 0.0
    %412 = vmatprep.subr.mxu0 0.0
    %413 = vmatpush2.msra.mxu0 0.0
    %414 = vmatprep.subr.mxu0 0.0
    %415 = vmatpush2.msra.mxu0 0.0
    %416 = vmatprep.subr.mxu0 0.0
    %417 = vmatpush2.msra.mxu0 0.0
    %418 = vmatprep.subr.mxu0 0.0
    %419 = vmatpush2.msra.mxu0 0.0
    %420 = vmatprep.subr.mxu0 0.0
    %421 = vmatpush2.msra.mxu0 0.0
    %422 = vmatprep.subr.mxu0 0.0
    %423 = vmatpush2.msra.mxu0 0.0
    %424 = vmatprep.subr.mxu0 0.0
    %425 = vmatpush2.msra.mxu0 0.0
    %426 = vmatprep.subr.mxu0 0.0
    %427 = vmatpush2.msra.mxu0 0.0
    %428 = vmatprep.subr.mxu0 0.0
    %429 = vmatpush2.msra.mxu0 0.0
    %430 = vmatprep.mubr.f32.mxu0 0.0
    %431 = vmatmul.mubr.f32.gmra.mxu0 %v340
    %v432 = vpop.f32.mrf.mxu0
    %v433 = vadd.f32 %v364, %v432
    %v434 = vpop.f32.mrf.mxu0
    %435 = vdwg.mxu0
    %s436 = scalar_lea.vmem [#allocation5], 512
    %v437 = vld [vmem:[%s436] sm:$0xff]
    %v438 = vld [vmem:[%s436 + $0x8] sm:$0xff]
    %v439 = vld [vmem:[%s436 + $0x10] sm:$0xff]
    %v440 = vld [vmem:[%s436 + $0x18] sm:$0xff]
    %v441 = vld [vmem:[%s436 + $0x20] sm:$0xff]
    %v442 = vld [vmem:[%s436 + $0x28] sm:$0xff]
    %v443 = vld [vmem:[%s436 + $0x30] sm:$0xff]
    %v444 = vld [vmem:[%s436 + $0x38] sm:$0xff]
    %v445 = vld [vmem:[%s436 + $0x40] sm:$0xff]
    %v446 = vld [vmem:[%s436 + $0x48] sm:$0xff]
    %v447 = vld [vmem:[%s436 + $0x50] sm:$0xff]
    %v448 = vld [vmem:[%s436 + $0x58] sm:$0xff]
    %v449 = vld [vmem:[%s436 + $0x60] sm:$0xff]
    %v450 = vld [vmem:[%s436 + $0x68] sm:$0xff]
    %v451 = vld [vmem:[%s436 + $0x70] sm:$0xff]
    %v452 = vld [vmem:[%s436 + $0x78] sm:$0xff]
    %s453 = scalar_lea.vmem [#allocation7], 4
    %v454 = vld [vmem:[%s453] sm:$0x1]
    %v456 = vlaneseq
    %v457 = vshrl.u32 %v456, 7
    %v458 = vsub.s32 0, %v457
    %v459 = vrot.slane %v454, %v458
    %461 = vmatprep.subr.mxu0 0.0
    %462 = vmatpush1.msra.mxu0 %v452
    %463 = vmatprep.subr.mxu0 0.0
    %464 = vmatpush1.msra.mxu0 %v451
    %465 = vmatprep.subr.mxu0 0.0
    %466 = vmatpush1.msra.mxu0 %v450
    %467 = vmatprep.subr.mxu0 0.0
    %468 = vmatpush1.msra.mxu0 %v449
    %469 = vmatprep.subr.mxu0 0.0
    %470 = vmatpush1.msra.mxu0 %v448
    %471 = vmatprep.subr.mxu0 0.0
    %472 = vmatpush1.msra.mxu0 %v447
    %473 = vmatprep.subr.mxu0 0.0
    %474 = vmatpush1.msra.mxu0 %v446
    %475 = vmatprep.subr.mxu0 0.0
    %476 = vmatpush1.msra.mxu0 %v445
    %477 = vmatprep.subr.mxu0 0.0
    %478 = vmatpush1.msra.mxu0 %v444
    %479 = vmatprep.subr.mxu0 0.0
    %480 = vmatpush1.msra.mxu0 %v443
    %481 = vmatprep.subr.mxu0 0.0
    %482 = vmatpush1.msra.mxu0 %v442
    %483 = vmatprep.subr.mxu0 0.0
    %484 = vmatpush1.msra.mxu0 %v441
    %485 = vmatprep.subr.mxu0 0.0
    %486 = vmatpush1.msra.mxu0 %v440
    %487 = vmatprep.subr.mxu0 0.0
    %488 = vmatpush1.msra.mxu0 %v439
    %489 = vmatprep.subr.mxu0 0.0
    %490 = vmatpush1.msra.mxu0 %v438
    %491 = vmatprep.subr.mxu0 0.0
    %492 = vmatpush1.msra.mxu0 %v437
    %493 = vmatprep.subr.mxu0 0.0
    %494 = vmatpush2.msra.mxu0 0.0
    %495 = vmatprep.subr.mxu0 0.0
    %496 = vmatpush2.msra.mxu0 0.0
    %497 = vmatprep.subr.mxu0 0.0
    %498 = vmatpush2.msra.mxu0 0.0
    %499 = vmatprep.subr.mxu0 0.0
    %500 = vmatpush2.msra.mxu0 0.0
    %501 = vmatprep.subr.mxu0 0.0
    %502 = vmatpush2.msra.mxu0 0.0
    %503 = vmatprep.subr.mxu0 0.0
    %504 = vmatpush2.msra.mxu0 0.0
    %505 = vmatprep.subr.mxu0 0.0
    %506 = vmatpush2.msra.mxu0 0.0
    %507 = vmatprep.subr.mxu0 0.0
    %508 = vmatpush2.msra.mxu0 0.0
    %509 = vmatprep.subr.mxu0 0.0
    %510 = vmatpush2.msra.mxu0 0.0
    %511 = vmatprep.subr.mxu0 0.0
    %512 = vmatpush2.msra.mxu0 0.0
    %513 = vmatprep.subr.mxu0 0.0
    %514 = vmatpush2.msra.mxu0 0.0
    %515 = vmatprep.subr.mxu0 0.0
    %516 = vmatpush2.msra.mxu0 0.0
    %517 = vmatprep.subr.mxu0 0.0
    %518 = vmatpush2.msra.mxu0 0.0
    %519 = vmatprep.subr.mxu0 0.0
    %520 = vmatpush2.msra.mxu0 0.0
    %521 = vmatprep.subr.mxu0 0.0
    %522 = vmatpush2.msra.mxu0 0.0
    %523 = vmatprep.subr.mxu0 0.0
    %524 = vmatpush2.msra.mxu0 0.0
    %525 = vmatprep.mubr.f32.mxu0 0.0
    %526 = vmatmul.mubr.f32.gmra.mxu0 %v433
    %v527 = vpop.f32.mrf.mxu0
    %v528 = vadd.f32 %v459, %v527
    %v529 = vpop.f32.mrf.mxu0
    %530 = vdwg.mxu0
    %v531 = vmax.f32 %v528, 0.0
    %s532 = scalar_lea.vmem [#allocation5], 640
    %v533 = vld [vmem:[%s532] sm:$0xff]
    %v534 = vld [vmem:[%s532 + $0x8] sm:$0xff]
    %v535 = vld [vmem:[%s532 + $0x10] sm:$0xff]
    %v536 = vld [vmem:[%s532 + $0x18] sm:$0xff]
    %v537 = vld [vmem:[%s532 + $0x20] sm:$0xff]
    %v538 = vld [vmem:[%s532 + $0x28] sm:$0xff]
    %v539 = vld [vmem:[%s532 + $0x30] sm:$0xff]
    %v540 = vld [vmem:[%s532 + $0x38] sm:$0xff]
    %v541 = vld [vmem:[%s532 + $0x40] sm:$0xff]
    %v542 = vld [vmem:[%s532 + $0x48] sm:$0xff]
    %v543 = vld [vmem:[%s532 + $0x50] sm:$0xff]
    %v544 = vld [vmem:[%s532 + $0x58] sm:$0xff]
    %v545 = vld [vmem:[%s532 + $0x60] sm:$0xff]
    %v546 = vld [vmem:[%s532 + $0x68] sm:$0xff]
    %v547 = vld [vmem:[%s532 + $0x70] sm:$0xff]
    %v548 = vld [vmem:[%s532 + $0x78] sm:$0xff]
    %s549 = scalar_lea.vmem [#allocation7], 5
    %v550 = vld [vmem:[%s549] sm:$0x1]
    %v552 = vlaneseq
    %v553 = vshrl.u32 %v552, 7
    %v554 = vsub.s32 0, %v553
    %v555 = vrot.slane %v550, %v554
    %557 = vmatprep.subr.mxu0 0.0
    %558 = vmatpush1.msra.mxu0 %v548
    %559 = vmatprep.subr.mxu0 0.0
    %560 = vmatpush1.msra.mxu0 %v547
    %561 = vmatprep.subr.mxu0 0.0
    %562 = vmatpush1.msra.mxu0 %v546
    %563 = vmatprep.subr.mxu0 0.0
    %564 = vmatpush1.msra.mxu0 %v545
    %565 = vmatprep.subr.mxu0 0.0
    %566 = vmatpush1.msra.mxu0 %v544
    %567 = vmatprep.subr.mxu0 0.0
    %568 = vmatpush1.msra.mxu0 %v543
    %569 = vmatprep.subr.mxu0 0.0
    %570 = vmatpush1.msra.mxu0 %v542
    %571 = vmatprep.subr.mxu0 0.0
    %572 = vmatpush1.msra.mxu0 %v541
    %573 = vmatprep.subr.mxu0 0.0
    %574 = vmatpush1.msra.mxu0 %v540
    %575 = vmatprep.subr.mxu0 0.0
    %576 = vmatpush1.msra.mxu0 %v539
    %577 = vmatprep.subr.mxu0 0.0
    %578 = vmatpush1.msra.mxu0 %v538
    %579 = vmatprep.subr.mxu0 0.0
    %580 = vmatpush1.msra.mxu0 %v537
    %581 = vmatprep.subr.mxu0 0.0
    %582 = vmatpush1.msra.mxu0 %v536
    %583 = vmatprep.subr.mxu0 0.0
    %584 = vmatpush1.msra.mxu0 %v535
    %585 = vmatprep.subr.mxu0 0.0
    %586 = vmatpush1.msra.mxu0 %v534
    %587 = vmatprep.subr.mxu0 0.0
    %588 = vmatpush1.msra.mxu0 %v533
    %589 = vmatprep.subr.mxu0 0.0
    %590 = vmatpush2.msra.mxu0 0.0
    %591 = vmatprep.subr.mxu0 0.0
    %592 = vmatpush2.msra.mxu0 0.0
    %593 = vmatprep.subr.mxu0 0.0
    %594 = vmatpush2.msra.mxu0 0.0
    %595 = vmatprep.subr.mxu0 0.0
    %596 = vmatpush2.msra.mxu0 0.0
    %597 = vmatprep.subr.mxu0 0.0
    %598 = vmatpush2.msra.mxu0 0.0
    %599 = vmatprep.subr.mxu0 0.0
    %600 = vmatpush2.msra.mxu0 0.0
    %601 = vmatprep.subr.mxu0 0.0
    %602 = vmatpush2.msra.mxu0 0.0
    %603 = vmatprep.subr.mxu0 0.0
    %604 = vmatpush2.msra.mxu0 0.0
    %605 = vmatprep.subr.mxu0 0.0
    %606 = vmatpush2.msra.mxu0 0.0
    %607 = vmatprep.subr.mxu0 0.0
    %608 = vmatpush2.msra.mxu0 0.0
    %609 = vmatprep.subr.mxu0 0.0
    %610 = vmatpush2.msra.mxu0 0.0
    %611 = vmatprep.subr.mxu0 0.0
    %612 = vmatpush2.msra.mxu0 0.0
    %613 = vmatprep.subr.mxu0 0.0
    %614 = vmatpush2.msra.mxu0 0.0
    %615 = vmatprep.subr.mxu0 0.0
    %616 = vmatpush2.msra.mxu0 0.0
    %617 = vmatprep.subr.mxu0 0.0
    %618 = vmatpush2.msra.mxu0 0.0
    %619 = vmatprep.subr.mxu0 0.0
    %620 = vmatpush2.msra.mxu0 0.0
    %621 = vmatprep.mubr.f32.mxu0 0.0
    %622 = vmatmul.mubr.f32.gmra.mxu0 %v531
    %v623 = vpop.f32.mrf.mxu0
    %v624 = vadd.f32 %v555, %v623
    %v625 = vpop.f32.mrf.mxu0
    %626 = vdwg.mxu0
    %v627 = vmax.f32 %v624, 0.0
    %s628 = scalar_lea.vmem [#allocation5], 768
    %v629 = vld [vmem:[%s628] sm:$0xff]
    %v630 = vld [vmem:[%s628 + $0x8] sm:$0xff]
    %v631 = vld [vmem:[%s628 + $0x10] sm:$0xff]
    %v632 = vld [vmem:[%s628 + $0x18] sm:$0xff]
    %v633 = vld [vmem:[%s628 + $0x20] sm:$0xff]
    %v634 = vld [vmem:[%s628 + $0x28] sm:$0xff]
    %v635 = vld [vmem:[%s628 + $0x30] sm:$0xff]
    %v636 = vld [vmem:[%s628 + $0x38] sm:$0xff]
    %v637 = vld [vmem:[%s628 + $0x40] sm:$0xff]
    %v638 = vld [vmem:[%s628 + $0x48] sm:$0xff]
    %v639 = vld [vmem:[%s628 + $0x50] sm:$0xff]
    %v640 = vld [vmem:[%s628 + $0x58] sm:$0xff]
    %v641 = vld [vmem:[%s628 + $0x60] sm:$0xff]
    %v642 = vld [vmem:[%s628 + $0x68] sm:$0xff]
    %v643 = vld [vmem:[%s628 + $0x70] sm:$0xff]
    %v644 = vld [vmem:[%s628 + $0x78] sm:$0xff]
    %s645 = scalar_lea.vmem [#allocation7], 6
    %v646 = vld [vmem:[%s645] sm:$0x1]
    %v648 = vlaneseq
    %v649 = vshrl.u32 %v648, 7
    %v650 = vsub.s32 0, %v649
    %v651 = vrot.slane %v646, %v650
    %653 = vmatprep.subr.mxu0 0.0
    %654 = vmatpush1.msra.mxu0 %v644
    %655 = vmatprep.subr.mxu0 0.0
    %656 = vmatpush1.msra.mxu0 %v643
    %657 = vmatprep.subr.mxu0 0.0
    %658 = vmatpush1.msra.mxu0 %v642
    %659 = vmatprep.subr.mxu0 0.0
    %660 = vmatpush1.msra.mxu0 %v641
    %661 = vmatprep.subr.mxu0 0.0
    %662 = vmatpush1.msra.mxu0 %v640
    %663 = vmatprep.subr.mxu0 0.0
    %664 = vmatpush1.msra.mxu0 %v639
    %665 = vmatprep.subr.mxu0 0.0
    %666 = vmatpush1.msra.mxu0 %v638
    %667 = vmatprep.subr.mxu0 0.0
    %668 = vmatpush1.msra.mxu0 %v637
    %669 = vmatprep.subr.mxu0 0.0
    %670 = vmatpush1.msra.mxu0 %v636
    %671 = vmatprep.subr.mxu0 0.0
    %672 = vmatpush1.msra.mxu0 %v635
    %673 = vmatprep.subr.mxu0 0.0
    %674 = vmatpush1.msra.mxu0 %v634
    %675 = vmatprep.subr.mxu0 0.0
    %676 = vmatpush1.msra.mxu0 %v633
    %677 = vmatprep.subr.mxu0 0.0
    %678 = vmatpush1.msra.mxu0 %v632
    %679 = vmatprep.subr.mxu0 0.0
    %680 = vmatpush1.msra.mxu0 %v631
    %681 = vmatprep.subr.mxu0 0.0
    %682 = vmatpush1.msra.mxu0 %v630
    %683 = vmatprep.subr.mxu0 0.0
    %684 = vmatpush1.msra.mxu0 %v629
    %685 = vmatprep.subr.mxu0 0.0
    %686 = vmatpush2.msra.mxu0 0.0
    %687 = vmatprep.subr.mxu0 0.0
    %688 = vmatpush2.msra.mxu0 0.0
    %689 = vmatprep.subr.mxu0 0.0
    %690 = vmatpush2.msra.mxu0 0.0
    %691 = vmatprep.subr.mxu0 0.0
    %692 = vmatpush2.msra.mxu0 0.0
    %693 = vmatprep.subr.mxu0 0.0
    %694 = vmatpush2.msra.mxu0 0.0
    %695 = vmatprep.subr.mxu0 0.0
    %696 = vmatpush2.msra.mxu0 0.0
    %697 = vmatprep.subr.mxu0 0.0
    %698 = vmatpush2.msra.mxu0 0.0
    %699 = vmatprep.subr.mxu0 0.0
    %700 = vmatpush2.msra.mxu0 0.0
    %701 = vmatprep.subr.mxu0 0.0
    %702 = vmatpush2.msra.mxu0 0.0
    %703 = vmatprep.subr.mxu0 0.0
    %704 = vmatpush2.msra.mxu0 0.0
    %705 = vmatprep.subr.mxu0 0.0
    %706 = vmatpush2.msra.mxu0 0.0
    %707 = vmatprep.subr.mxu0 0.0
    %708 = vmatpush2.msra.mxu0 0.0
    %709 = vmatprep.subr.mxu0 0.0
    %710 = vmatpush2.msra.mxu0 0.0
    %711 = vmatprep.subr.mxu0 0.0
    %712 = vmatpush2.msra.mxu0 0.0
    %713 = vmatprep.subr.mxu0 0.0
    %714 = vmatpush2.msra.mxu0 0.0
    %715 = vmatprep.subr.mxu0 0.0
    %716 = vmatpush2.msra.mxu0 0.0
    %717 = vmatprep.mubr.f32.mxu0 0.0
    %718 = vmatmul.mubr.f32.gmra.mxu0 %v627
    %v719 = vpop.f32.mrf.mxu0
    %v720 = vadd.f32 %v651, %v719
    %v721 = vpop.f32.mrf.mxu0
    %722 = vdwg.mxu0
    %v723 = vmax.f32 %v720, 0.0
    %s724 = scalar_lea.vmem [#allocation5], 896
    %v725 = vld [vmem:[%s724] sm:$0xff]
    %v726 = vld [vmem:[%s724 + $0x8] sm:$0xff]
    %v727 = vld [vmem:[%s724 + $0x10] sm:$0xff]
    %v728 = vld [vmem:[%s724 + $0x18] sm:$0xff]
    %v729 = vld [vmem:[%s724 + $0x20] sm:$0xff]
    %v730 = vld [vmem:[%s724 + $0x28] sm:$0xff]
    %v731 = vld [vmem:[%s724 + $0x30] sm:$0xff]
    %v732 = vld [vmem:[%s724 + $0x38] sm:$0xff]
    %v733 = vld [vmem:[%s724 + $0x40] sm:$0xff]
    %v734 = vld [vmem:[%s724 + $0x48] sm:$0xff]
    %v735 = vld [vmem:[%s724 + $0x50] sm:$0xff]
    %v736 = vld [vmem:[%s724 + $0x58] sm:$0xff]
    %v737 = vld [vmem:[%s724 + $0x60] sm:$0xff]
    %v738 = vld [vmem:[%s724 + $0x68] sm:$0xff]
    %v739 = vld [vmem:[%s724 + $0x70] sm:$0xff]
    %v740 = vld [vmem:[%s724 + $0x78] sm:$0xff]
    %s741 = scalar_lea.vmem [#allocation7], 7
    %v742 = vld [vmem:[%s741] sm:$0x1]
    %v744 = vlaneseq
    %v745 = vshrl.u32 %v744, 7
    %v746 = vsub.s32 0, %v745
    %v747 = vrot.slane %v742, %v746
    %749 = vmatprep.subr.mxu0 0.0
    %750 = vmatpush1.msra.mxu0 %v740
    %751 = vmatprep.subr.mxu0 0.0
    %752 = vmatpush1.msra.mxu0 %v739
    %753 = vmatprep.subr.mxu0 0.0
    %754 = vmatpush1.msra.mxu0 %v738
    %755 = vmatprep.subr.mxu0 0.0
    %756 = vmatpush1.msra.mxu0 %v737
    %757 = vmatprep.subr.mxu0 0.0
    %758 = vmatpush1.msra.mxu0 %v736
    %759 = vmatprep.subr.mxu0 0.0
    %760 = vmatpush1.msra.mxu0 %v735
    %761 = vmatprep.subr.mxu0 0.0
    %762 = vmatpush1.msra.mxu0 %v734
    %763 = vmatprep.subr.mxu0 0.0
    %764 = vmatpush1.msra.mxu0 %v733
    %765 = vmatprep.subr.mxu0 0.0
    %766 = vmatpush1.msra.mxu0 %v732
    %767 = vmatprep.subr.mxu0 0.0
    %768 = vmatpush1.msra.mxu0 %v731
    %769 = vmatprep.subr.mxu0 0.0
    %770 = vmatpush1.msra.mxu0 %v730
    %771 = vmatprep.subr.mxu0 0.0
    %772 = vmatpush1.msra.mxu0 %v729
    %773 = vmatprep.subr.mxu0 0.0
    %774 = vmatpush1.msra.mxu0 %v728
    %775 = vmatprep.subr.mxu0 0.0
    %776 = vmatpush1.msra.mxu0 %v727
    %777 = vmatprep.subr.mxu0 0.0
    %778 = vmatpush1.msra.mxu0 %v726
    %779 = vmatprep.subr.mxu0 0.0
    %780 = vmatpush1.msra.mxu0 %v725
    %781 = vmatprep.subr.mxu0 0.0
    %782 = vmatpush2.msra.mxu0 0.0
    %783 = vmatprep.subr.mxu0 0.0
    %784 = vmatpush2.msra.mxu0 0.0
    %785 = vmatprep.subr.mxu0 0.0
    %786 = vmatpush2.msra.mxu0 0.0
    %787 = vmatprep.subr.mxu0 0.0
    %788 = vmatpush2.msra.mxu0 0.0
    %789 = vmatprep.subr.mxu0 0.0
    %790 = vmatpush2.msra.mxu0 0.0
    %791 = vmatprep.subr.mxu0 0.0
    %792 = vmatpush2.msra.mxu0 0.0
    %793 = vmatprep.subr.mxu0 0.0
    %794 = vmatpush2.msra.mxu0 0.0
    %795 = vmatprep.subr.mxu0 0.0
    %796 = vmatpush2.msra.mxu0 0.0
    %797 = vmatprep.subr.mxu0 0.0
    %798 = vmatpush2.msra.mxu0 0.0
    %799 = vmatprep.subr.mxu0 0.0
    %800 = vmatpush2.msra.mxu0 0.0
    %801 = vmatprep.subr.mxu0 0.0
    %802 = vmatpush2.msra.mxu0 0.0
    %803 = vmatprep.subr.mxu0 0.0
    %804 = vmatpush2.msra.mxu0 0.0
    %805 = vmatprep.subr.mxu0 0.0
    %806 = vmatpush2.msra.mxu0 0.0
    %807 = vmatprep.subr.mxu0 0.0
    %808 = vmatpush2.msra.mxu0 0.0
    %809 = vmatprep.subr.mxu0 0.0
    %810 = vmatpush2.msra.mxu0 0.0
    %811 = vmatprep.subr.mxu0 0.0
    %812 = vmatpush2.msra.mxu0 0.0
    %813 = vmatprep.mubr.f32.mxu0 0.0
    %814 = vmatmul.mubr.f32.gmra.mxu0 %v723
    %v815 = vpop.f32.mrf.mxu0
    %v816 = vadd.f32 %v747, %v815
    %v817 = vpop.f32.mrf.mxu0
    %818 = vdwg.mxu0
    %v819 = vlaneseq
    %v820 = vand.u32 %v819, 127
    %vm821 = vcmp.lt.s32.totalorder %v820, 4
    %v822 = vsel %vm821, %v816, -inf
    %823 = vmax.xlane.f32.xlu0 %v822
    %v824 = vpop.xlane.xlu0 %823
    %v825 = vsub.f32 %v822, %v824
    %v826 = vmul.f32 %v825, 1.442695
    %v827 = vpow.pop %v826
    %828 = vadd.xlane.f32.xlu0 %v827
    %v829 = vpop.xlane.xlu0 %828
    %v830 = vlog2.pop %v829
    %v831 = vmul.f32 %v830, 0.6931472
    %v832 = vsub.f32 %v825, %v831
    %833 = vst [vmem:[#allocation8] sm:$0xff] %v832
    // Predicated region
    $region26: #{tpu_custom_call.1} parent=1 // pred_check
      _
    $region27: #{tpu_custom_call.1} parent=1 // pred_check_branch
      %835 = sbr.rel (0) target = $region29
    $region28: #{tpu_custom_call.1} parent=1 // pred_region
      %s837 = ssub.s32 128, 128
      %838 = vsyncadd [#allocation4], %s837
      %s840 = sshll.u32 [#allocation8], 4
      %s841 = int_to_ptr.vmem [resolvable:$true] %s840
      %843 = dma.vmem_to_hbm [thread:$0]  %s841, 128, %s3, [#allocation4]
    $region29: #{tpu_custom_call.1} parent=1 // pred_fallthru
      _
    // Predicated region
    $region30: #{tpu_custom_call.1} parent=1 // pred_check
      _
    $region31: #{tpu_custom_call.1} parent=1 // pred_check_branch
      %845 = sbr.rel (0) target = $region33
    $region32: #{tpu_custom_call.1} parent=1 // pred_region
      %846 = dma.done [#allocation4], 128
    $region33: #{tpu_custom_call.1} parent=1 // pred_fallthru
      _
    %847 = vsyncpa [#allocation3], 1
    %848 = vsyncpa [#allocation6], 1
    %849 = vsyncpa [#allocation4], 1

</llo_original>
